<compile_context>
chip_gen: v6e
topology: v6e:2x2x1
jax: 0.10.0
libtpu: 0.0.40
codegen_flags: <defaults>
</compile_context>

<pallas_src>
import jax
import jax.numpy as jnp
from jax.experimental import pallas as pl
from jax.experimental.pallas import tpu as pltpu

TM_MAX = 512  # row tile: multiple of 256 (v6e/v7x MXU) and of 128 (v5e MXU)


# ----------------------------- Pallas kernel -------------------------------
def mlp_score_kernel(x_ref, w1_ref, b1_ref, w2_ref, b2_ref, w3t_ref, b3_ref,
                     o_ref):
    # x_ref: (TM, d_in) in compute dtype (bf16); w1/w2 same; biases f32.
    x = x_ref[...]
    h1 = jnp.dot(x, w1_ref[...], preferred_element_type=jnp.float32) + b1_ref[...]
    h1 = jnp.maximum(h1, 0.0)                      # ReLU in f32
    h2 = jnp.dot(h1.astype(w2_ref.dtype), w2_ref[...],
                 preferred_element_type=jnp.float32) + b2_ref[...]
    h2 = jnp.maximum(h2, 0.0)                      # ReLU in f32
    # Layer 3 is (TM,16)@(16,1): keep it off the MXU (1 useful output lane)
    # and do multiply + cross-lane reduce on VPU/XLU; emit lane-dense (1, TM).
    score = jnp.sum(h2 * w3t_ref[...], axis=-1) + b3_ref[0]    # (TM,)
    o_ref[...] = score[None, :].astype(o_ref.dtype)            # (1, TM)


def mlp_score_pallas(status_inputs, params, *, compute_dtype=jnp.bfloat16):
    """Apply the 3-layer scoring MLP with a Pallas kernel; returns (N,) f32."""
    w1, b1, w2, b2, w3, b3 = params
    n, d_in = status_inputs.shape
    h1 = w1.shape[1]
    h2 = w2.shape[1]

    # Full-batch block when small; otherwise 512-row tiles with a masked
    # partial last block (no host-side zero-pad copy of the input).
    tm = n if n <= TM_MAX else TM_MAX
    grid = (pl.cdiv(n, tm),)

    x = status_inputs.astype(compute_dtype)
    w1c = w1.astype(compute_dtype)
    w2c = w2.astype(compute_dtype)
    w3t = w3.reshape(1, h2).astype(jnp.float32)    # row vector for VPU layer 3
    b3s = b3.reshape((1,)).astype(jnp.float32)     # scalar bias, lives in SMEM

    const = lambda shape: pl.BlockSpec(shape, lambda i: (0, 0))

    out = pl.pallas_call(
        mlp_score_kernel,
        out_shape=jax.ShapeDtypeStruct((1, n), jnp.float32),
        grid=grid,
        in_specs=[
            pl.BlockSpec((tm, d_in), lambda i: (i, 0)),      # streaming rows
            const((d_in, h1)), const((1, h1)),               # layer 1
            const((h1, h2)), const((1, h2)),                 # layer 2
            const((1, h2)),                                  # layer 3 weights
            pl.BlockSpec(memory_space=pltpu.MemorySpace.SMEM),  # layer 3 bias
        ],
        out_specs=pl.BlockSpec((1, tm), lambda i: (0, i)),   # lane-dense scores
        compiler_params=pltpu.CompilerParams(
            dimension_semantics=("parallel",)),
    )(x, w1c, b1, w2c, b2, w3t, b3s)

    return out[0]   # (N,) scores; equivalent of .squeeze(-1)


# ------------------------- module-equivalent wrapper ------------------------
class ResourcePolicyNetworkPallas:
    """JAX/Pallas port of ResourcePolicyNetwork.forward.

    embedding_model := nn.Embedding(num_resource_heuristics, emb_dims['heuristic'])
    mlp_score       := make_mlp(input_dim, hid_dims, 1, ReLU)
    """

    def __init__(self, key, num_resource_heuristics, num_executors,
                 num_dag_features, emb_dims, mlp_hid_dims,
                 compute_dtype=jnp.bfloat16):
        self.num_executors = num_executors
        self.num_dag_features = num_dag_features
        self.num_resource_heuristics = num_resource_heuristics
        self.compute_dtype = compute_dtype

        input_dim = (num_dag_features + emb_dims['dag'] + emb_dims['glob']
                     + emb_dims['heuristic'])

        keys = jax.random.split(key, 8)
        # deterministic synthetic "embedding_model" table (indexed by
        # arange(num_resource_heuristics) in forward)
        self.embedding_table = 0.1 * jax.random.normal(
            keys[0], (num_resource_heuristics, emb_dims['heuristic']),
            dtype=jnp.float32)

        dims = [input_dim] + list(mlp_hid_dims) + [1]
        params = []
        for i in range(len(dims) - 1):
            w = 0.1 * jax.random.normal(keys[i + 1], (dims[i], dims[i + 1]),
                                        dtype=jnp.float32)
            b = 0.01 * jax.random.normal(keys[i + 5], (1, dims[i + 1]),
                                         dtype=jnp.float32)
            params += [w, b]
        self.mlp_params = tuple(params)

    def __call__(self, dag_batch, h_dict, job_indices):
        ptr = dag_batch['ptr']
        dag_start_idxs = ptr[:-1]
        x_dag = dag_batch['x'][dag_start_idxs, :self.num_dag_features]
        x_dag = x_dag[job_indices]
        h_dag = h_dict['dag'][job_indices]

        if 'num_exec_acts' in dag_batch:
            _ = dag_batch['num_exec_acts'][job_indices]
        else:
            # PyTorch KeyError branch: unsqueeze(0) (scalar job_indices case)
            x_dag = x_dag[None]
            h_dag = h_dag[None]

        x_h_dag = jnp.concatenate([x_dag, h_dag], axis=1)

        H = self.num_resource_heuristics
        cd = self.compute_dtype
        # torch repeat_interleave(dim=0) == jnp.repeat(axis=0).
        # NOTE: the reference PyTorch module also repeat_interleaves the
        # heuristic embeddings (by h_glob.shape[0]) -- NOT .repeat/tile --
        # so jnp.repeat is the faithful port of the spec as written.
        x_h_dag_rpt = jnp.repeat(x_h_dag.astype(cd), H, axis=0)
        h_glob_rpt = jnp.repeat(h_dict['glob'].astype(cd), H, axis=0)
        actions = self.embedding_table            # embedding_model(arange(H))
        actions_rpt = jnp.repeat(actions.astype(cd),
                                 h_dict['glob'].shape[0], axis=0)

        # TODO(synk): fuse this repeat/concat into the kernel (split W1 by
        # feature group + scalar-prefetch-driven index maps) to avoid
        # materializing the (J*H, d_in) row matrix in HBM for huge batches.
        status_inputs = jnp.concatenate(
            [x_h_dag_rpt, h_glob_rpt, actions_rpt], axis=1)

        return mlp_score_pallas(status_inputs, self.mlp_params,
                                compute_dtype=cd)

    # pure-JAX references for correctness checking
    def reference_scores_f32(self, status_inputs):
        w1, b1, w2, b2, w3, b3 = self.mlp_params
        h = jnp.maximum(status_inputs @ w1 + b1, 0.0)
        h = jnp.maximum(h @ w2 + b2, 0.0)
        return (h @ w3 + b3)[:, 0]

    def reference_scores_mixed(self, status_inputs):
        # mirrors the kernel's bf16-input / f32-accumulation precision
        w1, b1, w2, b2, w3, b3 = self.mlp_params
        cd = self.compute_dtype
        h = jnp.dot(status_inputs.astype(cd), w1.astype(cd),
                    preferred_element_type=jnp.float32) + b1
        h = jnp.maximum(h, 0.0)
        h = jnp.dot(h.astype(cd), w2.astype(cd),
                    preferred_element_type=jnp.float32) + b2
        h = jnp.maximum(h, 0.0)
        return (h @ w3 + b3)[:, 0]


# ----------------------------------- main -----------------------------------
if __name__ == "__main__":
    key = jax.random.PRNGKey(0)
    k_net, k_x, k_hdag, k_hglob = jax.random.split(key, 4)

    # small, module-consistent shapes
    num_resource_heuristics = 4
    num_executors = 10
    num_dag_features = 3
    emb_dims = {'dag': 8, 'glob': 8, 'heuristic': 8}
    mlp_hid_dims = [32, 16]

    net = ResourcePolicyNetworkPallas(
        k_net, num_resource_heuristics, num_executors, num_dag_features,
        emb_dims, mlp_hid_dims)

    # synthetic batched-DAG inputs
    num_nodes, node_feat_dim = 20, 5
    ptr = jnp.array([0, 5, 10, 14, 20], dtype=jnp.int32)      # 4 graphs
    x_nodes = jax.random.normal(k_x, (num_nodes, node_feat_dim),
                                dtype=jnp.float32)
    job_indices = jnp.array([0, 2, 3], dtype=jnp.int32)       # J = 3 jobs

    dag_batch = {
        'ptr': ptr,
        'x': x_nodes,
        'num_exec_acts': jnp.arange(4, dtype=jnp.int32),      # present -> no unsqueeze
    }
    h_dict = {
        'dag': jax.random.normal(k_hdag, (4, emb_dims['dag']),
                                 dtype=jnp.float32),
        'glob': jax.random.normal(k_hglob, (3, emb_dims['glob']),
                                  dtype=jnp.float32),          # rows == len(job_indices)
    }

    scores = net(dag_batch, h_dict, job_indices)
    scores = jax.block_until_ready(scores)

    # sanity check against pure-JAX references of the MLP hot path
    dag_start_idxs = ptr[:-1]
    x_dag = x_nodes[dag_start_idxs, :num_dag_features][job_indices]
    h_dag = h_dict['dag'][job_indices]
    x_h_dag = jnp.concatenate([x_dag, h_dag], axis=1)
    status_inputs = jnp.concatenate([
        jnp.repeat(x_h_dag, num_resource_heuristics, axis=0),
        jnp.repeat(h_dict['glob'], num_resource_heuristics, axis=0),
        jnp.repeat(net.embedding_table, h_dict['glob'].shape[0], axis=0),
    ], axis=1)

    ref_mixed = net.reference_scores_mixed(status_inputs)   # same precision
    ref_f32 = net.reference_scores_f32(status_inputs)       # full-f32 module

    assert scores.shape == (job_indices.shape[0] * num_resource_heuristics,)
    assert jnp.allclose(scores, ref_mixed, atol=1e-4, rtol=1e-3), \
        float(jnp.max(jnp.abs(scores - ref_mixed)))
    assert jnp.allclose(scores, ref_f32, atol=5e-2, rtol=5e-2), \
        float(jnp.max(jnp.abs(scores - ref_f32)))

    print("KERNEL_OK")
</pallas_src>

<mosaic_0001>
module attributes {stable_mosaic.version = 11 : i64} {
  func.func @mlp_score_kernel(%arg0: i32, %arg1: memref<12x27xbf16, #tpu.memory_space<vmem>>, %arg2: memref<27x32xbf16, #tpu.memory_space<vmem>>, %arg3: memref<1x32xf32, #tpu.memory_space<vmem>>, %arg4: memref<32x16xbf16, #tpu.memory_space<vmem>>, %arg5: memref<1x16xf32, #tpu.memory_space<vmem>>, %arg6: memref<1x16xf32, #tpu.memory_space<vmem>>, %arg7: memref<1xf32, #tpu.memory_space<smem>>, %arg8: memref<1x12xf32, #tpu.memory_space<vmem>>) attributes {dimension_semantics = [#tpu.dimension_semantics<parallel>], iteration_bounds = array<i64: 1>, scalar_prefetch = 0 : i64, scratch_operands = 0 : i64, tpu.core_type = #tpu.core_type<tc>, window_params = [{transform_indices = @transform_0, window_bounds = array<i64: 12, 27>}, {pipeline_mode = #tpu.pipeline_mode<synchronous>, transform_indices = @transform_1, window_bounds = array<i64: 27, 32>}, {pipeline_mode = #tpu.pipeline_mode<synchronous>, transform_indices = @transform_2, window_bounds = array<i64: 1, 32>}, {pipeline_mode = #tpu.pipeline_mode<synchronous>, transform_indices = @transform_3, window_bounds = array<i64: 32, 16>}, {pipeline_mode = #tpu.pipeline_mode<synchronous>, transform_indices = @transform_4, window_bounds = array<i64: 1, 16>}, {pipeline_mode = #tpu.pipeline_mode<synchronous>, transform_indices = @transform_5, window_bounds = array<i64: 1, 16>}, {transform_indices = @transform_6, window_bounds = array<i64: 1>}, {transform_indices = @transform_7, window_bounds = array<i64: 1, 12>}]} {
    %c0 = arith.constant 0 : index
    %c0_0 = arith.constant 0 : index
    %0 = vector.load %arg1[%c0, %c0_0] : memref<12x27xbf16, #tpu.memory_space<vmem>>, vector<12x27xbf16>
    %c0_1 = arith.constant 0 : index
    %c0_2 = arith.constant 0 : index
    %1 = vector.load %arg2[%c0_1, %c0_2] : memref<27x32xbf16, #tpu.memory_space<vmem>>, vector<27x32xbf16>
    %cst = arith.constant dense<0.000000e+00> : vector<12x32xf32>
    %2 = tpu.matmul %0, %1, %cst {dimension_numbers = #tpu.dot_dimension_numbers<[1], [0], [0], [1], [0, 0, 1, 1], [], []>} : vector<12x27xbf16>, vector<27x32xbf16>, vector<12x32xf32> -> vector<12x32xf32>
    %c0_3 = arith.constant 0 : index
    %c0_4 = arith.constant 0 : index
    %3 = vector.load %arg3[%c0_3, %c0_4] : memref<1x32xf32, #tpu.memory_space<vmem>>, vector<1x32xf32>
    %4 = vector.broadcast %3 : vector<1x32xf32> to vector<12x32xf32>
    %5 = arith.addf %2, %4 : vector<12x32xf32>
    %cst_5 = arith.constant 0.000000e+00 : f32
    %6 = vector.broadcast %cst_5 : f32 to vector<12x32xf32>
    %7 = arith.maximumf %5, %6 : vector<12x32xf32>
    %8 = arith.truncf %7 : vector<12x32xf32> to vector<12x32xbf16>
    %c0_6 = arith.constant 0 : index
    %c0_7 = arith.constant 0 : index
    %9 = vector.load %arg4[%c0_6, %c0_7] : memref<32x16xbf16, #tpu.memory_space<vmem>>, vector<32x16xbf16>
    %cst_8 = arith.constant dense<0.000000e+00> : vector<12x16xf32>
    %10 = tpu.matmul %8, %9, %cst_8 {dimension_numbers = #tpu.dot_dimension_numbers<[1], [0], [0], [1], [0, 0, 1, 1], [], []>} : vector<12x32xbf16>, vector<32x16xbf16>, vector<12x16xf32> -> vector<12x16xf32>
    %c0_9 = arith.constant 0 : index
    %c0_10 = arith.constant 0 : index
    %11 = vector.load %arg5[%c0_9, %c0_10] : memref<1x16xf32, #tpu.memory_space<vmem>>, vector<1x16xf32>
    %12 = vector.broadcast %11 : vector<1x16xf32> to vector<12x16xf32>
    %13 = arith.addf %10, %12 : vector<12x16xf32>
    %cst_11 = arith.constant 0.000000e+00 : f32
    %14 = vector.broadcast %cst_11 : f32 to vector<12x16xf32>
    %15 = arith.maximumf %13, %14 : vector<12x16xf32>
    %c0_12 = arith.constant 0 : index
    %c0_13 = arith.constant 0 : index
    %16 = vector.load %arg6[%c0_12, %c0_13] : memref<1x16xf32, #tpu.memory_space<vmem>>, vector<1x16xf32>
    %17 = vector.broadcast %16 : vector<1x16xf32> to vector<12x16xf32>
    %18 = arith.mulf %15, %17 : vector<12x16xf32>
    %cst_14 = arith.constant dense<0.000000e+00> : vector<12xf32>
    %19 = vector.multi_reduction <add>, %18, %cst_14 [1] : vector<12x16xf32> to vector<12xf32>
    %c0_15 = arith.constant 0 : index
    %20 = memref.load %arg7[%c0_15] : memref<1xf32, #tpu.memory_space<smem>>
    %21 = vector.broadcast %20 : f32 to vector<12xf32>
    %22 = arith.addf %19, %21 : vector<12xf32>
    %23 = vector.shape_cast %22 : vector<12xf32> to vector<1x12xf32>
    %c0_16 = arith.constant 0 : index
    %c0_17 = arith.constant 0 : index
    %24 = vector.load %arg8[%c0_16, %c0_17] : memref<1x12xf32, #tpu.memory_space<vmem>>, vector<1x12xf32>
    tpu.vector_store %arg8[%c0_16, %c0_17], %23 {strides = array<i32>} : memref<1x12xf32, #tpu.memory_space<vmem>>, vector<1x12xf32>,
    return
  }
  func.func @transform_0(%arg0: i32) -> (i32, i32) {
    %c0_i32 = arith.constant 0 : i32
    %c0_i32_0 = arith.constant 0 : i32
    return %arg0, %c0_i32 : i32, i32
  }
  func.func @transform_1(%arg0: i32) -> (i32, i32) {
    %c0_i32 = arith.constant 0 : i32
    %c0_i32_0 = arith.constant 0 : i32
    %c0_i32_1 = arith.constant 0 : i32
    return %c0_i32, %c0_i32_0 : i32, i32
  }
  func.func @transform_2(%arg0: i32) -> (i32, i32) {
    %c0_i32 = arith.constant 0 : i32
    %c0_i32_0 = arith.constant 0 : i32
    %c0_i32_1 = arith.constant 0 : i32
    return %c0_i32, %c0_i32_0 : i32, i32
  }
  func.func @transform_3(%arg0: i32) -> (i32, i32) {
    %c0_i32 = arith.constant 0 : i32
    %c0_i32_0 = arith.constant 0 : i32
    %c0_i32_1 = arith.constant 0 : i32
    return %c0_i32, %c0_i32_0 : i32, i32
  }
  func.func @transform_4(%arg0: i32) -> (i32, i32) {
    %c0_i32 = arith.constant 0 : i32
    %c0_i32_0 = arith.constant 0 : i32
    %c0_i32_1 = arith.constant 0 : i32
    return %c0_i32, %c0_i32_0 : i32, i32
  }
  func.func @transform_5(%arg0: i32) -> (i32, i32) {
    %c0_i32 = arith.constant 0 : i32
    %c0_i32_0 = arith.constant 0 : i32
    %c0_i32_1 = arith.constant 0 : i32
    return %c0_i32, %c0_i32_0 : i32, i32
  }
  func.func @transform_6(%arg0: i32) -> i32 {
    %c0_i32 = arith.constant 0 : i32
    %c0_i32_0 = arith.constant 0 : i32
    return %c0_i32 : i32
  }
  func.func @transform_7(%arg0: i32) -> (i32, i32) {
    %c0_i32 = arith.constant 0 : i32
    %c0_i32_0 = arith.constant 0 : i32
    return %c0_i32, %arg0 : i32, i32
  }
}

</mosaic_0001>

<llo_original>
// kernel: tpu_custom_call.1
$region0: #{tpu_custom_call.1}
  #allocation0 [shape = 'u32[]', space=smem, size = 0x4, offset = 0x4, fixed_abs, tag = 'smem constant byte address 0x4 - core index']
  #allocation1 [shape = 'u32[144,128]{1,0:T(1,128)}', space=vmem, size = 0x12000, scoped, tag = 'internal scratch']
  #allocation2 [shape = 'f32[1]{0:T(128)S(6)}', space=smem, size = 0x200, scoped, tag = 'scoped memory for tpu_custom_call.1']
  %s0 = inlined_call_operand.vmem [shape: bf16[12,27], index: 0, kind: input, shape index: {}]
  %s1 = inlined_call_operand.vmem [shape: bf16[27,32], index: 1, kind: input, shape index: {}]
  %s2 = inlined_call_operand.vmem [shape: f32[1,32], index: 2, kind: input, shape index: {}]
  %s3 = inlined_call_operand.vmem [shape: bf16[32,16], index: 3, kind: input, shape index: {}]
  %s4 = inlined_call_operand.vmem [shape: f32[1,16], index: 4, kind: input, shape index: {}]
  %s5 = inlined_call_operand.vmem [shape: f32[1,16], index: 5, kind: input, shape index: {}]
  %s6 = inlined_call_operand.<no memory space> [shape: f32[1], index: 6, kind: input, shape index: {}]
  %s7 = inlined_call_operand.hbm [shape: f32[1,12], index: 7, kind: output, shape index: {}]
  %s8 = sld [smem:[#allocation0]]
  $region38: #{tpu_custom_call.1} parent=0
    _
  %s10 = ssub.s32 1, %s8
  %s11 = scalar_select 0, %s10, %s8
  %12 = sst [smem:[#allocation2]] %s6
  $region1: #{tpu_custom_call.1} parent=0
    #allocation3 [shape = 'u8[512]{0}', space=vmem, size = 0x400, scoped, tag = 'output window, operand 0, single buffered']
    #allocation4 [shape = 's32[1]{0}', space=sflag, size = 0x4, scoped, tag = 'scoped memory for tpu_custom_call.1']
    %13 = vsyncpa [#allocation4], 0
    // Predicated region
    $region2: #{tpu_custom_call.1} parent=1 // pred_check
      _
    $region3: #{tpu_custom_call.1} parent=1 // pred_check_branch
      %15 = sbr.rel (0) target = $region5
    $region4: #{tpu_custom_call.1} parent=1 // pred_region
      _
    $region5: #{tpu_custom_call.1} parent=1 // pred_fallthru
      _
    // Predicated region
    $region6: #{tpu_custom_call.1} parent=1 // pred_check
      _
    $region7: #{tpu_custom_call.1} parent=1 // pred_check_branch
      %17 = sbr.rel (0) target = $region9
    $region8: #{tpu_custom_call.1} parent=1 // pred_region
      _
    $region9: #{tpu_custom_call.1} parent=1 // pred_fallthru
      _
    // Predicated region
    $region10: #{tpu_custom_call.1} parent=1 // pred_check
      _
    $region11: #{tpu_custom_call.1} parent=1 // pred_check_branch
      %19 = sbr.rel (0) target = $region13
    $region12: #{tpu_custom_call.1} parent=1 // pred_region
      _
    $region13: #{tpu_custom_call.1} parent=1 // pred_fallthru
      _
    // Predicated region
    $region14: #{tpu_custom_call.1} parent=1 // pred_check
      _
    $region15: #{tpu_custom_call.1} parent=1 // pred_check_branch
      %21 = sbr.rel (0) target = $region17
    $region16: #{tpu_custom_call.1} parent=1 // pred_region
      _
    $region17: #{tpu_custom_call.1} parent=1 // pred_fallthru
      _
    // Predicated region
    $region18: #{tpu_custom_call.1} parent=1 // pred_check
      _
    $region19: #{tpu_custom_call.1} parent=1 // pred_check_branch
      %23 = sbr.rel (0) target = $region21
    $region20: #{tpu_custom_call.1} parent=1 // pred_region
      _
    $region21: #{tpu_custom_call.1} parent=1 // pred_fallthru
      _
    // Predicated region
    $region22: #{tpu_custom_call.1} parent=1 // pred_check
      _
    $region23: #{tpu_custom_call.1} parent=1 // pred_check_branch
      %25 = sbr.rel (0) target = $region25
    $region24: #{tpu_custom_call.1} parent=1 // pred_region
      _
    $region25: #{tpu_custom_call.1} parent=1 // pred_fallthru
      _
    // Predicated region
    $region26: #{tpu_custom_call.1} parent=1 // pred_check
      _
    $region27: #{tpu_custom_call.1} parent=1 // pred_check_branch
      %27 = sbr.rel (0) target = $region29
    $region28: #{tpu_custom_call.1} parent=1 // pred_region
      _
    $region29: #{tpu_custom_call.1} parent=1 // pred_fallthru
      _
    %v29 = vld [vmem:[%s0] sm:$0xf]
    %v30 = vld [vmem:[%s0 + $0x4] sm:$0x3]
    %v31 = vld [vmem:[%s1] sm:$0xf]
    %v32 = vld [vmem:[%s1 + $0x4] sm:$0xf]
    %v33 = vld [vmem:[%s1 + $0x8] sm:$0xf]
    %v34 = vld [vmem:[%s1 + $0xc] sm:$0x3]
    %v35 = vld [vmem:[%s2] sm:$0x1]
    %v37 = vlaneseq
    %v38 = vshrl.u32 %v37, 7
    %v39 = vsub.s32 0, %v38
    %v40 = vrot.slane %v35, %v39
    %v44 = vunpack.c.l.b16 %v29
    %v45 = vunpack.c.l.b16 %v30
    %v46 = vpack.c.b16 %v45, %v44
    %v51 = vunpack.c.l.b16 %v31
    %v52 = vunpack.c.l.b16 %v32
    %v53 = vunpack.c.l.b16 %v33
    %v54 = vunpack.c.l.b16 %v34
    %v55 = vpack.c.b16 %v52, %v51
    %v56 = vpack.c.b16 %v54, %v53
    %vm58 = vcmask 220160
    %v60 = vsel %vm58, %v46, 0
    %vm62 = vcmask 1044480
    %vm63 = vcmask 1045504
    %v64 = vsel %vm62, 4294967295, 65535
    %v65 = vsel %vm63, %v64, 0
    %v67 = vand.u32 %v56, %v65
    %69 = vmatprep.subr.bf16.mxu0 0
    %70 = vmatpush1.bf16.msra.mxu0 0
    %71 = vmatprep.subr.bf16.mxu0 0
    %72 = vmatpush1.bf16.msra.mxu0 0
    %73 = vmatprep.subr.bf16.mxu0 0
    %74 = vmatpush1.bf16.msra.mxu0 0
    %75 = vmatprep.subr.bf16.mxu0 0
    %76 = vmatpush1.bf16.msra.mxu0 0
    %77 = vmatprep.subr.bf16.mxu0 0
    %78 = vmatpush1.bf16.msra.mxu0 0
    %79 = vmatprep.subr.bf16.mxu0 0
    %80 = vmatpush1.bf16.msra.mxu0 0
    %81 = vmatprep.subr.bf16.mxu0 0
    %82 = vmatpush1.bf16.msra.mxu0 %v67
    %83 = vmatprep.subr.bf16.mxu0 0
    %84 = vmatpush1.bf16.msra.mxu0 %v55
    %85 = vmatprep.subr.bf16.mxu0 0
    %86 = vmatpush2.bf16.msra.mxu0 0
    %87 = vmatprep.subr.bf16.mxu0 0
    %88 = vmatpush2.bf16.msra.mxu0 0
    %89 = vmatprep.subr.bf16.mxu0 0
    %90 = vmatpush2.bf16.msra.mxu0 0
    %91 = vmatprep.subr.bf16.mxu0 0
    %92 = vmatpush2.bf16.msra.mxu0 0
    %93 = vmatprep.subr.bf16.mxu0 0
    %94 = vmatpush2.bf16.msra.mxu0 0
    %95 = vmatprep.subr.bf16.mxu0 0
    %96 = vmatpush2.bf16.msra.mxu0 0
    %97 = vmatprep.subr.bf16.mxu0 0
    %98 = vmatpush2.bf16.msra.mxu0 0
    %99 = vmatprep.subr.bf16.mxu0 0
    %100 = vmatpush2.bf16.msra.mxu0 0
    %101 = vmatprep.mubr.bf16.mxu0 0
    %102 = vmatmul.mubr.bf16.gmra.mxu0 %v60
    %v103 = vpop.f32.mrf.mxu0
    %v104 = vadd.f32 %v40, %v103
    %v105 = vpop.f32.mrf.mxu0
    %v106 = vpop.f32.mrf.mxu0
    %v107 = vadd.f32 %v40, %v106
    %v108 = vpop.f32.mrf.mxu0
    %109 = vdwg.mxu0
    %v110 = vmax.f32 %v104, 0.0
    %v111 = vmax.f32 %v107, 0.0
    %v112 = vpack.c.bf16 %v111, %v110
    %v113 = vld [vmem:[%s3] sm:$0xf]
    %v114 = vld [vmem:[%s3 + $0x4] sm:$0xf]
    %v115 = vld [vmem:[%s3 + $0x8] sm:$0xf]
    %v116 = vld [vmem:[%s3 + $0xc] sm:$0xf]
    %v117 = vld [vmem:[%s4] sm:$0x1]
    %v119 = vlaneseq
    %v120 = vshrl.u32 %v119, 7
    %v121 = vsub.s32 0, %v120
    %v122 = vrot.slane %v117, %v121
    %v128 = vunpack.c.l.b16 %v113
    %v129 = vunpack.c.l.b16 %v114
    %v130 = vunpack.c.l.b16 %v115
    %v131 = vunpack.c.l.b16 %v116
    %v132 = vpack.c.b16 %v129, %v128
    %v133 = vpack.c.b16 %v131, %v130
    %vm136 = vcmask 261120
    %v138 = vsel %vm136, %v112, 0
    %140 = vmatprep.subr.bf16.mxu0 0
    %141 = vmatpush1.bf16.msra.mxu0 0
    %142 = vmatprep.subr.bf16.mxu0 0
    %143 = vmatpush1.bf16.msra.mxu0 0
    %144 = vmatprep.subr.bf16.mxu0 0
    %145 = vmatpush1.bf16.msra.mxu0 0
    %146 = vmatprep.subr.bf16.mxu0 0
    %147 = vmatpush1.bf16.msra.mxu0 0
    %148 = vmatprep.subr.bf16.mxu0 0
    %149 = vmatpush1.bf16.msra.mxu0 0
    %150 = vmatprep.subr.bf16.mxu0 0
    %151 = vmatpush1.bf16.msra.mxu0 0
    %152 = vmatprep.subr.bf16.mxu0 0
    %153 = vmatpush1.bf16.msra.mxu0 %v133
    %154 = vmatprep.subr.bf16.mxu0 0
    %155 = vmatpush1.bf16.msra.mxu0 %v132
    %156 = vmatprep.subr.bf16.mxu0 0
    %157 = vmatpush2.bf16.msra.mxu0 0
    %158 = vmatprep.subr.bf16.mxu0 0
    %159 = vmatpush2.bf16.msra.mxu0 0
    %160 = vmatprep.subr.bf16.mxu0 0
    %161 = vmatpush2.bf16.msra.mxu0 0
    %162 = vmatprep.subr.bf16.mxu0 0
    %163 = vmatpush2.bf16.msra.mxu0 0
    %164 = vmatprep.subr.bf16.mxu0 0
    %165 = vmatpush2.bf16.msra.mxu0 0
    %166 = vmatprep.subr.bf16.mxu0 0
    %167 = vmatpush2.bf16.msra.mxu0 0
    %168 = vmatprep.subr.bf16.mxu0 0
    %169 = vmatpush2.bf16.msra.mxu0 0
    %170 = vmatprep.subr.bf16.mxu0 0
    %171 = vmatpush2.bf16.msra.mxu0 0
    %172 = vmatprep.mubr.bf16.mxu0 0
    %173 = vmatmul.mubr.bf16.gmra.mxu0 %v138
    %v174 = vpop.f32.mrf.mxu0
    %v175 = vadd.f32 %v122, %v174
    %v176 = vpop.f32.mrf.mxu0
    %v177 = vpop.f32.mrf.mxu0
    %v178 = vadd.f32 %v122, %v177
    %v179 = vpop.f32.mrf.mxu0
    %180 = vdwg.mxu0
    %v181 = vmax.f32 %v175, 0.0
    %v182 = vmax.f32 %v178, 0.0
    %v183 = vld [vmem:[%s5] sm:$0x1]
    %v185 = vlaneseq
    %v186 = vshrl.u32 %v185, 7
    %v187 = vsub.s32 0, %v186
    %v188 = vrot.slane %v183, %v187
    %v190 = vmul.f32 %v181, %v188
    %v191 = vmul.f32 %v182, %v188
    %vm192 = vcmask 130048
    %v193 = vsel %vm192, %v190, 0.0
    %194 = vadd.xlane.f32.xlu0 %v193
    %v195 = vpop.xlane.xlu0 %194
    %vm196 = vcmask 125952
    %v197 = vsel %vm196, %v191, 0.0
    %198 = vadd.xlane.f32.xlu0 %v197
    %v199 = vpop.xlane.xlu0 %198
    %s200 = sld [smem:[#allocation2]]
    %v201 = vstv %s200
    %v202 = vadd.f32 %v195, %v201
    %v203 = vadd.f32 %v199, %v201
    %v206 = vlaneseq
    %v207 = vand.u32 %v206, 127
    %v208 = vlaneseq
    %v209 = vshrl.u32 %v208, 7
    %v210 = vsub.s32 %v207, %v209
    %v211 = vrot.slane %v202, %v210
    %v212 = vadd.s32 %v207, 4294967288
    %v213 = vlaneseq
    %v214 = vshrl.u32 %v213, 7
    %v215 = vsub.s32 %v212, %v214
    %v216 = vrot.slane %v203, %v215
    %vm217 = vcmask 130112
    %v218 = vsel %vm217, %v216, %v211
    %vm220 = vcmask 90112
    %221 = vst.msk [vmem:[#allocation3] sm:$0x1] %vm220, %v218
    // Predicated region
    $region30: #{tpu_custom_call.1} parent=1 // pred_check
      _
    $region31: #{tpu_custom_call.1} parent=1 // pred_check_branch
      %223 = sbr.rel (0) target = $region33
    $region32: #{tpu_custom_call.1} parent=1 // pred_region
      %s225 = ssub.s32 16, 16
      %226 = vsyncadd [#allocation4], %s225
      %s228 = sshll.u32 [#allocation3], 4
      %s229 = int_to_ptr.vmem [resolvable:$true] %s228
      %231 = dma.vmem_to_hbm [thread:$0]  %s229, 16, %s7, [#allocation4]
    $region33: #{tpu_custom_call.1} parent=1 // pred_fallthru
      _
    // Predicated region
    $region34: #{tpu_custom_call.1} parent=1 // pred_check
      _
    $region35: #{tpu_custom_call.1} parent=1 // pred_check_branch
      %233 = sbr.rel (0) target = $region37
    $region36: #{tpu_custom_call.1} parent=1 // pred_region
      %234 = dma.done [#allocation4], 16
    $region37: #{tpu_custom_call.1} parent=1 // pred_fallthru
      _
    %235 = vsyncpa [#allocation4], 1

</llo_original>
